<compile_context>
chip_gen: v5e
topology: v5e:2x2
jax: 0.10.0
libtpu: 0.0.40
codegen_flags: <defaults>
</compile_context>

<pallas_src>
import functools

import jax
import jax.numpy as jnp
from jax.experimental import pallas as pl
from jax.experimental.pallas import tpu as pltpu


# ----------------------------------------------------------------------------
# Fused kernel: conv-matmul + ReLU + pooled-sum accumulate per HW tile,
# head (MLP projector + FC) epilogue on the last HW step.
# ----------------------------------------------------------------------------
def fused_kernel(p_ref, wc_ref, bc_ref,
                 w1_ref, b1_ref, g_ref, be_ref,
                 w2_ref, b2_ref, wfc_ref, bfc_ref,
                 z_ref, logits_ref,
                 acc_ref,
                 *, hw_valid, t_hw, need_mask):
    s = pl.program_id(1)

    @pl.when(s == 0)
    def _init():
        acc_ref[...] = jnp.zeros_like(acc_ref)

    # conv-as-matmul for this spatial tile: (t_hw, Kp) @ (Kp, Cout) -> (t_hw, Cout)
    conv = jnp.dot(p_ref[0], wc_ref[...], preferred_element_type=jnp.float32)
    conv = jnp.maximum(conv + bc_ref[...], 0.0)

    if need_mask:
        # zero out spatial rows that are pure padding (relu(bias) != 0 otherwise)
        row = s * t_hw + jax.lax.broadcasted_iota(jnp.int32, conv.shape, 0)
        conv = jnp.where(row < hw_valid, conv, 0.0)

    # global-average-pool accumulation: reduce over the sublane (row) axis
    acc_ref[...] += jnp.sum(conv, axis=0, keepdims=True)

    @pl.when(s == pl.num_programs(1) - 1)
    def _epilogue():
        pooled = acc_ref[...] * (1.0 / hw_valid)                       # (1, Cout) AdaptiveAvgPool2d(1)
        h = jnp.dot(pooled, w1_ref[...],
                    preferred_element_type=jnp.float32) + b1_ref[...]  # Linear(Cout, mid)
        h = jnp.maximum(h * g_ref[...] + be_ref[...], 0.0)             # BN1d (folded) + ReLU
        z = jnp.dot(h, w2_ref[...],
                    preferred_element_type=jnp.float32) + b2_ref[...]  # Linear(mid, proj_out)
        z_ref[0] = z
        logits_ref[0] = jnp.dot(z, wfc_ref[...],
                                preferred_element_type=jnp.float32) + bfc_ref[...]  # fc


# ----------------------------------------------------------------------------
# Forward pass
# ----------------------------------------------------------------------------
@functools.partial(jax.jit, static_argnames=("t_hw", "matmul_dtype"))
def mlp_classifier_forward(x, params, *, t_hw=None, matmul_dtype=jnp.float32):
    B, Cin, H, W = x.shape
    Ho, Wo = H // 2, W // 2
    HW = Ho * Wo
    K = Cin * 9
    Cout = params["conv_w"].shape[0]
    mid = params["w1"].shape[1]
    out_dim = params["w2"].shape[1]
    ncls = params["wfc"].shape[1]

    # HW tile: multiple of 8 sublanes; default = whole (padded) feature map capped at
    # 512 rows/step (bigger tiles amortize the ~0.35us per-grid-step overhead).
    hw8 = -(-HW // 8) * 8
    if t_hw is None:
        t_hw = min(512, hw8)
    t_hw = -(-min(t_hw, hw8) // 8) * 8
    HWp = -(-HW // t_hw) * t_hw
    Kp = -(-K // 8) * 8   # pad contraction dim; use 128/256 multiples for real backbone widths

    # --- synthetic encoder (stand-in for pretrained backbone) ---
    # TODO(synk): real model uses get_encoder(...) (e.g. ImageNet ResNet); replaced by a
    # single 3x3/s2 conv + ReLU. At real sizes prefer lax.conv (or in-kernel DMA patch
    # gather) for the backbone to avoid the 9x im2col HBM amplification.
    xp = jnp.pad(x, ((0, 0), (0, 0), (1, 1), (1, 1)))
    cols = [xp[:, :, kh:kh + 2 * Ho:2, kw:kw + 2 * Wo:2]
            for kh in range(3) for kw in range(3)]           # each (B, Cin, Ho, Wo)
    p = jnp.stack(cols, axis=2)                              # (B, Cin, 9, Ho, Wo)
    p = p.transpose(0, 3, 4, 1, 2).reshape(B, HW, K)         # col = c*9 + kh*3 + kw (matches OIHW flatten)
    p = jnp.pad(p, ((0, 0), (0, HWp - HW), (0, Kp - K))).astype(matmul_dtype)

    wconv = params["conv_w"].reshape(Cout, K).T              # (K, Cout)
    wconv = jnp.pad(wconv, ((0, Kp - K), (0, 0))).astype(matmul_dtype)
    bconv = params["conv_b"].reshape(1, Cout)

    # Fold BatchNorm1d inference params: (h - rm) / sqrt(rv + eps) * gamma + beta
    eps = 1e-5
    gamma_eff = params["bn_g"] / jnp.sqrt(params["bn_rv"] + eps)
    beta_eff = params["bn_b"] - params["bn_rm"] * gamma_eff

    kernel = functools.partial(fused_kernel, hw_valid=HW, t_hw=t_hw,
                               need_mask=(HWp != HW))

    z3, logits3 = pl.pallas_call(
        kernel,
        out_shape=(jax.ShapeDtypeStruct((B, 1, out_dim), jnp.float32),
                   jax.ShapeDtypeStruct((B, 1, ncls), jnp.float32)),
        grid=(B, HWp // t_hw),
        in_specs=[
            pl.BlockSpec((1, t_hw, Kp),   lambda b, s: (b, s, 0)),   # im2col patches tile
            pl.BlockSpec((Kp, Cout),      lambda b, s: (0, 0)),      # conv weight (resident)
            pl.BlockSpec((1, Cout),       lambda b, s: (0, 0)),      # conv bias
            pl.BlockSpec((Cout, mid),     lambda b, s: (0, 0)),      # w1
            pl.BlockSpec((1, mid),        lambda b, s: (0, 0)),      # b1
            pl.BlockSpec((1, mid),        lambda b, s: (0, 0)),      # BN gamma_eff
            pl.BlockSpec((1, mid),        lambda b, s: (0, 0)),      # BN beta_eff
            pl.BlockSpec((mid, out_dim),  lambda b, s: (0, 0)),      # w2
            pl.BlockSpec((1, out_dim),    lambda b, s: (0, 0)),      # b2
            pl.BlockSpec((out_dim, ncls), lambda b, s: (0, 0)),      # fc weight
            pl.BlockSpec((1, ncls),       lambda b, s: (0, 0)),      # fc bias
        ],
        out_specs=(pl.BlockSpec((1, 1, out_dim), lambda b, s: (b, 0, 0)),
                   pl.BlockSpec((1, 1, ncls),    lambda b, s: (b, 0, 0))),
        scratch_shapes=[pltpu.VMEM((1, Cout), jnp.float32)],
        compiler_params=pltpu.CompilerParams(
            dimension_semantics=("parallel", "arbitrary")),
    )(p, wconv, bconv,
      params["w1"], params["b1"].reshape(1, mid),
      gamma_eff.reshape(1, mid), beta_eff.reshape(1, mid),
      params["w2"], params["b2"].reshape(1, out_dim),
      params["wfc"], params["bfc"].reshape(1, ncls))

    return dict(logits=logits3.reshape(B, ncls), feats=z3.reshape(B, out_dim))


# ----------------------------------------------------------------------------
# Params / reference
# ----------------------------------------------------------------------------
def make_params(key, cin=3, cout=64, mid=512, proj_out=128, ncls=10):
    ks = jax.random.split(key, 12)
    s = lambda fan_in: 1.0 / jnp.sqrt(fan_in)
    return dict(
        conv_w=jax.random.normal(ks[0], (cout, cin, 3, 3), jnp.float32) * s(cin * 9),
        conv_b=jax.random.normal(ks[1], (cout,), jnp.float32) * 0.05,
        w1=jax.random.normal(ks[2], (cout, mid), jnp.float32) * s(cout),
        b1=jax.random.normal(ks[3], (mid,), jnp.float32) * 0.05,
        bn_g=1.0 + 0.1 * jax.random.normal(ks[4], (mid,), jnp.float32),
        bn_b=0.1 * jax.random.normal(ks[5], (mid,), jnp.float32),
        bn_rm=0.1 * jax.random.normal(ks[6], (mid,), jnp.float32),
        bn_rv=0.5 + 0.5 * jnp.abs(jax.random.normal(ks[7], (mid,), jnp.float32)),
        w2=jax.random.normal(ks[8], (mid, proj_out), jnp.float32) * s(mid),
        b2=jax.random.normal(ks[9], (proj_out,), jnp.float32) * 0.05,
        wfc=jax.random.normal(ks[10], (proj_out, ncls), jnp.float32) * s(proj_out),
        bfc=jax.random.normal(ks[11], (ncls,), jnp.float32) * 0.05,
    )


def _hdot(a, b):
    return jnp.dot(a, b, precision=jax.lax.Precision.HIGHEST)


def reference_forward(x, params):
    # Independent pure-JAX reference (uses XLA conv, not im2col).
    conv = jax.lax.conv_general_dilated(
        x, params["conv_w"], window_strides=(2, 2), padding=((1, 1), (1, 1)),
        dimension_numbers=("NCHW", "OIHW", "NCHW"),
        precision=jax.lax.Precision.HIGHEST)
    conv = jnp.maximum(conv + params["conv_b"][None, :, None, None], 0.0)
    pooled = conv.mean(axis=(2, 3))
    eps = 1e-5
    h = _hdot(pooled, params["w1"]) + params["b1"]
    h = (h - params["bn_rm"]) / jnp.sqrt(params["bn_rv"] + eps) * params["bn_g"] + params["bn_b"]
    h = jnp.maximum(h, 0.0)
    z = _hdot(h, params["w2"]) + params["b2"]
    logits = _hdot(z, params["wfc"]) + params["bfc"]
    return dict(logits=logits, feats=z)


if __name__ == "__main__":
    key = jax.random.PRNGKey(0)
    kx1, kx2, kp = jax.random.split(key, 3)
    B, Cin, NCLS, POUT = 2, 3, 10, 128
    params = make_params(kp, cin=Cin, cout=64, mid=512, proj_out=POUT, ncls=NCLS)

    # Case 1: multi-step HW reduction (32x32 -> 16x16 map; t_hw=64 -> 4 steps/batch).
    x1 = jax.random.normal(kx1, (B, Cin, 32, 32), jnp.float32)
    out1 = mlp_classifier_forward(x1, params, t_hw=64)
    jax.block_until_ready(out1)
    ref1 = reference_forward(x1, params)
    assert out1["logits"].shape == (B, NCLS) and out1["feats"].shape == (B, POUT)
    assert jnp.allclose(out1["logits"], ref1["logits"], atol=5e-4, rtol=5e-4)
    assert jnp.allclose(out1["feats"], ref1["feats"], atol=5e-4, rtol=5e-4)

    # Case 2: ragged spatial extent (18x18 -> 9x9 = 81 positions, padded + masked in-kernel).
    x2 = jax.random.normal(kx2, (B, Cin, 18, 18), jnp.float32)
    out2 = mlp_classifier_forward(x2, params)
    jax.block_until_ready(out2)
    ref2 = reference_forward(x2, params)
    assert jnp.allclose(out2["logits"], ref2["logits"], atol=5e-4, rtol=5e-4)
    assert jnp.allclose(out2["feats"], ref2["feats"], atol=5e-4, rtol=5e-4)

    # Case 3: bf16 matmul operands (v6e/v7x MXU path), f32 accumulation -> loose tolerance.
    out3 = mlp_classifier_forward(x1, params, t_hw=64, matmul_dtype=jnp.bfloat16)
    jax.block_until_ready(out3)
    assert float(jnp.max(jnp.abs(out3["logits"] - ref1["logits"]))) < 0.1
    assert float(jnp.max(jnp.abs(out3["feats"] - ref1["feats"]))) < 0.1

    print("KERNEL_OK")
</pallas_src>

<mosaic_0001>
module attributes {stable_mosaic.version = 11 : i64} {
  func.func @fused_kernel(%arg0: i32, %arg1: i32, %arg2: memref<1x64x32xf32, #tpu.memory_space<vmem>>, %arg3: memref<32x64xf32, #tpu.memory_space<vmem>>, %arg4: memref<1x64xf32, #tpu.memory_space<vmem>>, %arg5: memref<64x512xf32, #tpu.memory_space<vmem>>, %arg6: memref<1x512xf32, #tpu.memory_space<vmem>>, %arg7: memref<1x512xf32, #tpu.memory_space<vmem>>, %arg8: memref<1x512xf32, #tpu.memory_space<vmem>>, %arg9: memref<512x128xf32, #tpu.memory_space<vmem>>, %arg10: memref<1x128xf32, #tpu.memory_space<vmem>>, %arg11: memref<128x10xf32, #tpu.memory_space<vmem>>, %arg12: memref<1x10xf32, #tpu.memory_space<vmem>>, %arg13: memref<1x1x128xf32, #tpu.memory_space<vmem>>, %arg14: memref<1x1x10xf32, #tpu.memory_space<vmem>>, %arg15: memref<1x64xf32, #tpu.memory_space<vmem>>) attributes {dimension_semantics = [#tpu.dimension_semantics<parallel>, #tpu.dimension_semantics<arbitrary>], iteration_bounds = array<i64: 2, 4>, scalar_prefetch = 0 : i64, scratch_operands = 1 : i64, tpu.core_type = #tpu.core_type<tc>, window_params = [{transform_indices = @transform_0, window_bounds = array<i64: 1, 64, 32>}, {pipeline_mode = #tpu.pipeline_mode<synchronous>, transform_indices = @transform_1, window_bounds = array<i64: 32, 64>}, {pipeline_mode = #tpu.pipeline_mode<synchronous>, transform_indices = @transform_2, window_bounds = array<i64: 1, 64>}, {pipeline_mode = #tpu.pipeline_mode<synchronous>, transform_indices = @transform_3, window_bounds = array<i64: 64, 512>}, {pipeline_mode = #tpu.pipeline_mode<synchronous>, transform_indices = @transform_4, window_bounds = array<i64: 1, 512>}, {pipeline_mode = #tpu.pipeline_mode<synchronous>, transform_indices = @transform_5, window_bounds = array<i64: 1, 512>}, {pipeline_mode = #tpu.pipeline_mode<synchronous>, transform_indices = @transform_6, window_bounds = array<i64: 1, 512>}, {pipeline_mode = #tpu.pipeline_mode<synchronous>, transform_indices = @transform_7, window_bounds = array<i64: 512, 128>}, {pipeline_mode = #tpu.pipeline_mode<synchronous>, transform_indices = @transform_8, window_bounds = array<i64: 1, 128>}, {pipeline_mode = #tpu.pipeline_mode<synchronous>, transform_indices = @transform_9, window_bounds = array<i64: 128, 10>}, {pipeline_mode = #tpu.pipeline_mode<synchronous>, transform_indices = @transform_10, window_bounds = array<i64: 1, 10>}, {transform_indices = @transform_11, window_bounds = array<i64: 1, 1, 128>}, {transform_indices = @transform_12, window_bounds = array<i64: 1, 1, 10>}]} {
    %c0_i32 = arith.constant 0 : i32
    %0 = arith.cmpi eq, %arg1, %c0_i32 : i32
    %1 = arith.extui %0 : i1 to i32
    %c0_i32_0 = arith.constant 0 : i32
    %2 = arith.cmpi ne, %1, %c0_i32_0 : i32
    scf.if %2 {
      %cst_14 = arith.constant 0.000000e+00 : f32
      %20 = vector.broadcast %cst_14 : f32 to vector<1x64xf32>
      %c0_15 = arith.constant 0 : index
      %c0_16 = arith.constant 0 : index
      %21 = vector.load %arg15[%c0_15, %c0_16] : memref<1x64xf32, #tpu.memory_space<vmem>>, vector<1x64xf32>
      tpu.vector_store %arg15[%c0_15, %c0_16], %20 {strides = array<i32>} : memref<1x64xf32, #tpu.memory_space<vmem>>, vector<1x64xf32>,
    } else {
    }
    %c0 = arith.constant 0 : index
    %c0_1 = arith.constant 0 : index
    %c0_2 = arith.constant 0 : index
    %3 = vector.load %arg2[%c0, %c0_1, %c0_2] : memref<1x64x32xf32, #tpu.memory_space<vmem>>, vector<1x64x32xf32>
    %4 = vector.shape_cast %3 : vector<1x64x32xf32> to vector<64x32xf32>
    %c0_3 = arith.constant 0 : index
    %c0_4 = arith.constant 0 : index
    %5 = vector.load %arg3[%c0_3, %c0_4] : memref<32x64xf32, #tpu.memory_space<vmem>>, vector<32x64xf32>
    %cst = arith.constant dense<0.000000e+00> : vector<64x64xf32>
    %6 = tpu.matmul %4, %5, %cst {dimension_numbers = #tpu.dot_dimension_numbers<[1], [0], [0], [1], [0, 0, 1, 1], [], []>} : vector<64x32xf32>, vector<32x64xf32>, vector<64x64xf32> -> vector<64x64xf32>
    %c0_5 = arith.constant 0 : index
    %c0_6 = arith.constant 0 : index
    %7 = vector.load %arg4[%c0_5, %c0_6] : memref<1x64xf32, #tpu.memory_space<vmem>>, vector<1x64xf32>
    %8 = vector.broadcast %7 : vector<1x64xf32> to vector<64x64xf32>
    %9 = arith.addf %6, %8 : vector<64x64xf32>
    %cst_7 = arith.constant 0.000000e+00 : f32
    %10 = vector.broadcast %cst_7 : f32 to vector<64x64xf32>
    %11 = arith.maximumf %9, %10 : vector<64x64xf32>
    %c0_8 = arith.constant 0 : index
    %c0_9 = arith.constant 0 : index
    %12 = vector.load %arg15[%c0_8, %c0_9] : memref<1x64xf32, #tpu.memory_space<vmem>>, vector<1x64xf32>
    %cst_10 = arith.constant dense<0.000000e+00> : vector<64xf32>
    %13 = vector.multi_reduction <add>, %11, %cst_10 [0] : vector<64x64xf32> to vector<64xf32>
    %14 = vector.shape_cast %13 : vector<64xf32> to vector<1x64xf32>
    %15 = arith.addf %12, %14 : vector<1x64xf32>
    %c0_11 = arith.constant 0 : index
    %c0_12 = arith.constant 0 : index
    %16 = vector.load %arg15[%c0_11, %c0_12] : memref<1x64xf32, #tpu.memory_space<vmem>>, vector<1x64xf32>
    tpu.vector_store %arg15[%c0_11, %c0_12], %15 {strides = array<i32>} : memref<1x64xf32, #tpu.memory_space<vmem>>, vector<1x64xf32>,
    %c3_i32 = arith.constant 3 : i32
    %17 = arith.cmpi eq, %arg1, %c3_i32 : i32
    %18 = arith.extui %17 : i1 to i32
    %c0_i32_13 = arith.constant 0 : i32
    %19 = arith.cmpi ne, %18, %c0_i32_13 : i32
    scf.if %19 {
      %c0_14 = arith.constant 0 : index
      %c0_15 = arith.constant 0 : index
      %20 = vector.load %arg15[%c0_14, %c0_15] : memref<1x64xf32, #tpu.memory_space<vmem>>, vector<1x64xf32>
      %cst_16 = arith.constant 3.906250e-03 : f32
      %21 = vector.broadcast %cst_16 : f32 to vector<1x64xf32>
      %22 = arith.mulf %20, %21 : vector<1x64xf32>
      %c0_17 = arith.constant 0 : index
      %c0_18 = arith.constant 0 : index
      %23 = vector.load %arg5[%c0_17, %c0_18] : memref<64x512xf32, #tpu.memory_space<vmem>>, vector<64x512xf32>
      %cst_19 = arith.constant dense<0.000000e+00> : vector<1x512xf32>
      %24 = tpu.matmul %22, %23, %cst_19 {dimension_numbers = #tpu.dot_dimension_numbers<[1], [0], [0], [1], [0, 0, 1, 1], [], []>} : vector<1x64xf32>, vector<64x512xf32>, vector<1x512xf32> -> vector<1x512xf32>
      %c0_20 = arith.constant 0 : index
      %c0_21 = arith.constant 0 : index
      %25 = vector.load %arg6[%c0_20, %c0_21] : memref<1x512xf32, #tpu.memory_space<vmem>>, vector<1x512xf32>
      %26 = arith.addf %24, %25 : vector<1x512xf32>
      %c0_22 = arith.constant 0 : index
      %c0_23 = arith.constant 0 : index
      %27 = vector.load %arg7[%c0_22, %c0_23] : memref<1x512xf32, #tpu.memory_space<vmem>>, vector<1x512xf32>
      %28 = arith.mulf %26, %27 : vector<1x512xf32>
      %c0_24 = arith.constant 0 : index
      %c0_25 = arith.constant 0 : index
      %29 = vector.load %arg8[%c0_24, %c0_25] : memref<1x512xf32, #tpu.memory_space<vmem>>, vector<1x512xf32>
      %30 = arith.addf %28, %29 : vector<1x512xf32>
      %cst_26 = arith.constant 0.000000e+00 : f32
      %31 = vector.broadcast %cst_26 : f32 to vector<1x512xf32>
      %32 = arith.maximumf %30, %31 : vector<1x512xf32>
      %c0_27 = arith.constant 0 : index
      %c0_28 = arith.constant 0 : index
      %33 = vector.load %arg9[%c0_27, %c0_28] : memref<512x128xf32, #tpu.memory_space<vmem>>, vector<512x128xf32>
      %cst_29 = arith.constant dense<0.000000e+00> : vector<1x128xf32>
      %34 = tpu.matmul %32, %33, %cst_29 {dimension_numbers = #tpu.dot_dimension_numbers<[1], [0], [0], [1], [0, 0, 1, 1], [], []>} : vector<1x512xf32>, vector<512x128xf32>, vector<1x128xf32> -> vector<1x128xf32>
      %c0_30 = arith.constant 0 : index
      %c0_31 = arith.constant 0 : index
      %35 = vector.load %arg10[%c0_30, %c0_31] : memref<1x128xf32, #tpu.memory_space<vmem>>, vector<1x128xf32>
      %36 = arith.addf %34, %35 : vector<1x128xf32>
      %c0_32 = arith.constant 0 : index
      %c0_33 = arith.constant 0 : index
      %c0_34 = arith.constant 0 : index
      %37 = vector.load %arg13[%c0_32, %c0_33, %c0_34] : memref<1x1x128xf32, #tpu.memory_space<vmem>>, vector<1x1x128xf32>
      %38 = vector.shape_cast %37 : vector<1x1x128xf32> to vector<1x128xf32>
      %39 = vector.shape_cast %36 : vector<1x128xf32> to vector<1x1x128xf32>
      tpu.vector_store %arg13[%c0_32, %c0_33, %c0_34], %39 {strides = array<i32>} : memref<1x1x128xf32, #tpu.memory_space<vmem>>, vector<1x1x128xf32>,
      %c0_35 = arith.constant 0 : index
      %c0_36 = arith.constant 0 : index
      %40 = vector.load %arg11[%c0_35, %c0_36] : memref<128x10xf32, #tpu.memory_space<vmem>>, vector<128x10xf32>
      %cst_37 = arith.constant dense<0.000000e+00> : vector<1x10xf32>
      %41 = tpu.matmul %36, %40, %cst_37 {dimension_numbers = #tpu.dot_dimension_numbers<[1], [0], [0], [1], [0, 0, 1, 1], [], []>} : vector<1x128xf32>, vector<128x10xf32>, vector<1x10xf32> -> vector<1x10xf32>
      %c0_38 = arith.constant 0 : index
      %c0_39 = arith.constant 0 : index
      %42 = vector.load %arg12[%c0_38, %c0_39] : memref<1x10xf32, #tpu.memory_space<vmem>>, vector<1x10xf32>
      %43 = arith.addf %41, %42 : vector<1x10xf32>
      %c0_40 = arith.constant 0 : index
      %c0_41 = arith.constant 0 : index
      %c0_42 = arith.constant 0 : index
      %44 = vector.load %arg14[%c0_40, %c0_41, %c0_42] : memref<1x1x10xf32, #tpu.memory_space<vmem>>, vector<1x1x10xf32>
      %45 = vector.shape_cast %44 : vector<1x1x10xf32> to vector<1x10xf32>
      %46 = vector.shape_cast %43 : vector<1x10xf32> to vector<1x1x10xf32>
      tpu.vector_store %arg14[%c0_40, %c0_41, %c0_42], %46 {strides = array<i32>} : memref<1x1x10xf32, #tpu.memory_space<vmem>>, vector<1x1x10xf32>,
    } else {
    }
    return
  }
  func.func @transform_0(%arg0: i32, %arg1: i32) -> (i32, i32, i32) {
    %c0_i32 = arith.constant 0 : i32
    %c0_i32_0 = arith.constant 0 : i32
    return %arg0, %arg1, %c0_i32 : i32, i32, i32
  }
  func.func @transform_1(%arg0: i32, %arg1: i32) -> (i32, i32) {
    %c0_i32 = arith.constant 0 : i32
    %c0_i32_0 = arith.constant 0 : i32
    %c0_i32_1 = arith.constant 0 : i32
    return %c0_i32, %c0_i32_0 : i32, i32
  }
  func.func @transform_2(%arg0: i32, %arg1: i32) -> (i32, i32) {
    %c0_i32 = arith.constant 0 : i32
    %c0_i32_0 = arith.constant 0 : i32
    %c0_i32_1 = arith.constant 0 : i32
    return %c0_i32, %c0_i32_0 : i32, i32
  }
  func.func @transform_3(%arg0: i32, %arg1: i32) -> (i32, i32) {
    %c0_i32 = arith.constant 0 : i32
    %c0_i32_0 = arith.constant 0 : i32
    %c0_i32_1 = arith.constant 0 : i32
    return %c0_i32, %c0_i32_0 : i32, i32
  }
  func.func @transform_4(%arg0: i32, %arg1: i32) -> (i32, i32) {
    %c0_i32 = arith.constant 0 : i32
    %c0_i32_0 = arith.constant 0 : i32
    %c0_i32_1 = arith.constant 0 : i32
    return %c0_i32, %c0_i32_0 : i32, i32
  }
  func.func @transform_5(%arg0: i32, %arg1: i32) -> (i32, i32) {
    %c0_i32 = arith.constant 0 : i32
    %c0_i32_0 = arith.constant 0 : i32
    %c0_i32_1 = arith.constant 0 : i32
    return %c0_i32, %c0_i32_0 : i32, i32
  }
  func.func @transform_6(%arg0: i32, %arg1: i32) -> (i32, i32) {
    %c0_i32 = arith.constant 0 : i32
    %c0_i32_0 = arith.constant 0 : i32
    %c0_i32_1 = arith.constant 0 : i32
    return %c0_i32, %c0_i32_0 : i32, i32
  }
  func.func @transform_7(%arg0: i32, %arg1: i32) -> (i32, i32) {
    %c0_i32 = arith.constant 0 : i32
    %c0_i32_0 = arith.constant 0 : i32
    %c0_i32_1 = arith.constant 0 : i32
    return %c0_i32, %c0_i32_0 : i32, i32
  }
  func.func @transform_8(%arg0: i32, %arg1: i32) -> (i32, i32) {
    %c0_i32 = arith.constant 0 : i32
    %c0_i32_0 = arith.constant 0 : i32
    %c0_i32_1 = arith.constant 0 : i32
    return %c0_i32, %c0_i32_0 : i32, i32
  }
  func.func @transform_9(%arg0: i32, %arg1: i32) -> (i32, i32) {
    %c0_i32 = arith.constant 0 : i32
    %c0_i32_0 = arith.constant 0 : i32
    %c0_i32_1 = arith.constant 0 : i32
    return %c0_i32, %c0_i32_0 : i32, i32
  }
  func.func @transform_10(%arg0: i32, %arg1: i32) -> (i32, i32) {
    %c0_i32 = arith.constant 0 : i32
    %c0_i32_0 = arith.constant 0 : i32
    %c0_i32_1 = arith.constant 0 : i32
    return %c0_i32, %c0_i32_0 : i32, i32
  }
  func.func @transform_11(%arg0: i32, %arg1: i32) -> (i32, i32, i32) {
    %c0_i32 = arith.constant 0 : i32
    %c0_i32_0 = arith.constant 0 : i32
    %c0_i32_1 = arith.constant 0 : i32
    return %arg0, %c0_i32, %c0_i32_0 : i32, i32, i32
  }
  func.func @transform_12(%arg0: i32, %arg1: i32) -> (i32, i32, i32) {
    %c0_i32 = arith.constant 0 : i32
    %c0_i32_0 = arith.constant 0 : i32
    %c0_i32_1 = arith.constant 0 : i32
    return %arg0, %c0_i32, %c0_i32_0 : i32, i32, i32
  }
}

</mosaic_0001>

<llo_original>
// kernel: mlp_classifier_forward.1
$region0: #{mlp_classifier_forward.1}
  #allocation0 [shape = 'u32[]', space=smem, size = 0x4, offset = 0x4, fixed_abs, tag = 'smem constant byte address 0x4 - core index']
  #allocation1 [shape = 'u32[72,128]{1,0:T(1,128)}', space=vmem, size = 0x9000, scoped, tag = 'internal scratch']
  #allocation2 [shape = 'f32[1,64]{1,0:T(1,128)}', space=vmem, size = 0x200, scoped, tag = 'scratch operand']
  %s0 = inlined_call_operand.vmem [shape: f32[2,256,32], index: 0, kind: input, shape index: {}]
  %s1 = inlined_call_operand.vmem [shape: f32[32,64], index: 1, kind: input, shape index: {}]
  %s2 = inlined_call_operand.vmem [shape: f32[1,64], index: 2, kind: input, shape index: {}]
  %s3 = inlined_call_operand.vmem [shape: f32[64,512], index: 3, kind: input, shape index: {}]
  %s4 = inlined_call_operand.vmem [shape: f32[1,512], index: 4, kind: input, shape index: {}]
  %s5 = inlined_call_operand.vmem [shape: f32[1,512], index: 5, kind: input, shape index: {}]
  %s6 = inlined_call_operand.vmem [shape: f32[1,512], index: 6, kind: input, shape index: {}]
  %s7 = inlined_call_operand.vmem [shape: f32[512,128], index: 7, kind: input, shape index: {}]
  %s8 = inlined_call_operand.vmem [shape: f32[1,128], index: 8, kind: input, shape index: {}]
  %s9 = inlined_call_operand.vmem [shape: f32[128,10], index: 9, kind: input, shape index: {}]
  %s10 = inlined_call_operand.vmem [shape: f32[1,10], index: 10, kind: input, shape index: {}]
  %s11 = inlined_call_operand.hbm [shape: f32[2,1,128], index: 11, kind: output, shape index: {0}]
  %s12 = inlined_call_operand.hbm [shape: f32[2,1,10], index: 12, kind: output, shape index: {1}]
  %13 = xla_tuple %s11, %s12
  %s14 = sld [smem:[#allocation0]]
  $region93: #{mlp_classifier_forward.1} parent=0
    _
  %s16 = ssub.s32 1, %s14
  %s17 = scalar_select 0, %s16, %s14
  $region1: #{mlp_classifier_forward.1} parent=0
    #allocation3 [shape = 'u8[1024]{0}', space=vmem, size = 0x400, scoped, tag = 'output window, operand 0']
    #allocation4 [shape = 's32[2]{0}', space=sflag, size = 0x8, scoped, tag = 'scoped memory for mlp_classifier_forward.1']
    #allocation5 [shape = 'u8[1024]{0}', space=vmem, size = 0x400, scoped, tag = 'output window, operand 1']
    #allocation6 [shape = 's32[2]{0}', space=sflag, size = 0x8, scoped, tag = 'scoped memory for mlp_classifier_forward.1']
    %18 = vsyncpa [#allocation4], 0
    %s19 = scalar_lea.sflag [#allocation4], 1
    %20 = vsyncpa %s19, 0
    %21 = vsyncpa [#allocation6], 0
    %s22 = scalar_lea.sflag [#allocation6], 1
    %23 = vsyncpa %s22, 0
    loop: start=0, step=1, limit=10
    $region2: #{mlp_classifier_forward.1} parent=1 // loop_pre_header
      _
    $region3: #{mlp_classifier_forward.1} parent=1 // loop_header
      %s25 = sphi 0, %s29
      %p26 = scmp.ge.s32.totalorder %s25, 10
      %s32 = sphi 0, %s44
      %s33 = sphi 0, %s40
      %s34 = sphi 0, %s32
      %s35 = sphi 0, %s33
      %s36 = sphi 0, %s34
      %s37 = sphi 0, %s35
      %s49 = sphi 0, %s51
      %s52 = sphi 0, %s49
      %s53 = sphi 0, %s52
      %s69 = sphi 0, %s53
      %s73 = sphi 0, %s73
      %s75 = sphi 0, %s73
      %s76 = sphi 0, %s75
      %s90 = sphi 0, %s76
      %s94 = sphi 0, %s94
      %s96 = sphi 0, %s94
      %s97 = sphi 0, %s96
      %s111 = sphi 0, %s97
      %s115 = sphi 0, %s115
      %s117 = sphi 0, %s115
      %s118 = sphi 0, %s117
      %s132 = sphi 0, %s118
      %s136 = sphi 0, %s136
      %s138 = sphi 0, %s136
      %s139 = sphi 0, %s138
      %s153 = sphi 0, %s139
      %s157 = sphi 0, %s157
      %s159 = sphi 0, %s157
      %s160 = sphi 0, %s159
      %s174 = sphi 0, %s160
      %s178 = sphi 0, %s178
      %s180 = sphi 0, %s178
      %s181 = sphi 0, %s180
      %s195 = sphi 0, %s181
      %s199 = sphi 0, %s199
      %s201 = sphi 0, %s199
      %s202 = sphi 0, %s201
      %s216 = sphi 0, %s202
      %s220 = sphi 0, %s220
      %s222 = sphi 0, %s220
      %s223 = sphi 0, %s222
      %s237 = sphi 0, %s223
      %s241 = sphi 0, %s241
      %s243 = sphi 0, %s241
      %s244 = sphi 0, %s243
      %s258 = sphi 0, %s244
      %s262 = sphi 0, %s262
      %s264 = sphi 0, %s262
      %s265 = sphi 0, %s264
      %s279 = sphi 0, %s265
      %s285 = sphi 0, %s287
      %s288 = sphi 0, %s285
      %s289 = sphi 0, %s288
      %s305 = sphi 0, %s289
      %s311 = sphi 0, %s313
      %s314 = sphi 0, %s311
      %s315 = sphi 0, %s314
      %s331 = sphi 0, %s315
    $region4: #{mlp_classifier_forward.1} parent=1 // loop_header_branch
      %28 = sbr.rel (%p26) target = $region8
    $region5: #{mlp_classifier_forward.1} parent=1 // loop_body
      %s30 = ssub.s32 %s25, 1
      %s31 = ssub.s32 %s25, 2
      %s38 = sadd.s32 1, %s33
      %p39 = scmp.ge.s32.totalorder %s38, 4
      %s40 = scalar_select %p39, 0, %s38
      %s41 = sadd.s32 1, %s32
      %s42 = scalar_select %p39, %s41, %s32
      %p43 = scmp.ge.s32.totalorder %s42, 2
      %s44 = scalar_select %p43, 0, %s42
      %s45 = ssub.s32 %s32, %s44
      %s46 = ssub.s32 %s33, %s40
      %s47 = sor.u32 %s45, %s46
      %p48 = scmp.eq.s32.totalorder %s47, 0
      %s50 = sadd.s32 %s49, 1
      %s51 = scalar_select %p48, %s49, %s50
      %p54 = pneg %p48
      %p55 = scmp.eq.s32.totalorder %s25, 7
      %p56 = por %p54, %p55
      %p57 = scmp.ne.s32.totalorder %s49, %s52
      %p58 = scmp.eq.s32.totalorder %s25, 0
      %p59 = por %p57, %p58
      %p60 = scmp.ne.s32.totalorder %s49, %s52
      %p61 = scmp.eq.s32.totalorder %s30, 7
      %p62 = por %p60, %p61
      %p63 = scmp.ne.s32.totalorder %s52, %s53
      %p64 = scmp.eq.s32.totalorder %s30, 0
      %p65 = por %p63, %p64
      %p66 = scmp.ne.s32.totalorder %s52, %s53
      %p67 = scmp.eq.s32.totalorder %s31, 7
      %p68 = por %p66, %p67
      %p70 = scmp.ne.s32.totalorder %s53, %s69
      %p71 = scmp.eq.s32.totalorder %s31, 0
      %p72 = por %p70, %p71
      %s74 = sadd.s32 %s73, 1
      %p77 = scmp.eq.s32.totalorder %s25, 7
      %p78 = scmp.ne.s32.totalorder %s73, %s75
      %p79 = scmp.eq.s32.totalorder %s25, 0
      %p80 = por %p78, %p79
      %p81 = scmp.ne.s32.totalorder %s73, %s75
      %p82 = scmp.eq.s32.totalorder %s30, 7
      %p83 = por %p81, %p82
      %p84 = scmp.ne.s32.totalorder %s75, %s76
      %p85 = scmp.eq.s32.totalorder %s30, 0
      %p86 = por %p84, %p85
      %p87 = scmp.ne.s32.totalorder %s75, %s76
      %p88 = scmp.eq.s32.totalorder %s31, 7
      %p89 = por %p87, %p88
      %p91 = scmp.ne.s32.totalorder %s76, %s90
      %p92 = scmp.eq.s32.totalorder %s31, 0
      %p93 = por %p91, %p92
      %s95 = sadd.s32 %s94, 1
      %p98 = scmp.eq.s32.totalorder %s25, 7
      %p99 = scmp.ne.s32.totalorder %s94, %s96
      %p100 = scmp.eq.s32.totalorder %s25, 0
      %p101 = por %p99, %p100
      %p102 = scmp.ne.s32.totalorder %s94, %s96
      %p103 = scmp.eq.s32.totalorder %s30, 7
      %p104 = por %p102, %p103
      %p105 = scmp.ne.s32.totalorder %s96, %s97
      %p106 = scmp.eq.s32.totalorder %s30, 0
      %p107 = por %p105, %p106
      %p108 = scmp.ne.s32.totalorder %s96, %s97
      %p109 = scmp.eq.s32.totalorder %s31, 7
      %p110 = por %p108, %p109
      %p112 = scmp.ne.s32.totalorder %s97, %s111
      %p113 = scmp.eq.s32.totalorder %s31, 0
      %p114 = por %p112, %p113
      %s116 = sadd.s32 %s115, 1
      %p119 = scmp.eq.s32.totalorder %s25, 7
      %p120 = scmp.ne.s32.totalorder %s115, %s117
      %p121 = scmp.eq.s32.totalorder %s25, 0
      %p122 = por %p120, %p121
      %p123 = scmp.ne.s32.totalorder %s115, %s117
      %p124 = scmp.eq.s32.totalorder %s30, 7
      %p125 = por %p123, %p124
      %p126 = scmp.ne.s32.totalorder %s117, %s118
      %p127 = scmp.eq.s32.totalorder %s30, 0
      %p128 = por %p126, %p127
      %p129 = scmp.ne.s32.totalorder %s117, %s118
      %p130 = scmp.eq.s32.totalorder %s31, 7
      %p131 = por %p129, %p130
      %p133 = scmp.ne.s32.totalorder %s118, %s132
      %p134 = scmp.eq.s32.totalorder %s31, 0
      %p135 = por %p133, %p134
      %s137 = sadd.s32 %s136, 1
      %p140 = scmp.eq.s32.totalorder %s25, 7
      %p141 = scmp.ne.s32.totalorder %s136, %s138
      %p142 = scmp.eq.s32.totalorder %s25, 0
      %p143 = por %p141, %p142
      %p144 = scmp.ne.s32.totalorder %s136, %s138
      %p145 = scmp.eq.s32.totalorder %s30, 7
      %p146 = por %p144, %p145
      %p147 = scmp.ne.s32.totalorder %s138, %s139
      %p148 = scmp.eq.s32.totalorder %s30, 0
      %p149 = por %p147, %p148
      %p150 = scmp.ne.s32.totalorder %s138, %s139
      %p151 = scmp.eq.s32.totalorder %s31, 7
      %p152 = por %p150, %p151
      %p154 = scmp.ne.s32.totalorder %s139, %s153
      %p155 = scmp.eq.s32.totalorder %s31, 0
      %p156 = por %p154, %p155
      %s158 = sadd.s32 %s157, 1
      %p161 = scmp.eq.s32.totalorder %s25, 7
      %p162 = scmp.ne.s32.totalorder %s157, %s159
      %p163 = scmp.eq.s32.totalorder %s25, 0
      %p164 = por %p162, %p163
      %p165 = scmp.ne.s32.totalorder %s157, %s159
      %p166 = scmp.eq.s32.totalorder %s30, 7
      %p167 = por %p165, %p166
      %p168 = scmp.ne.s32.totalorder %s159, %s160
      %p169 = scmp.eq.s32.totalorder %s30, 0
      %p170 = por %p168, %p169
      %p171 = scmp.ne.s32.totalorder %s159, %s160
      %p172 = scmp.eq.s32.totalorder %s31, 7
      %p173 = por %p171, %p172
      %p175 = scmp.ne.s32.totalorder %s160, %s174
      %p176 = scmp.eq.s32.totalorder %s31, 0
      %p177 = por %p175, %p176
      %s179 = sadd.s32 %s178, 1
      %p182 = scmp.eq.s32.totalorder %s25, 7
      %p183 = scmp.ne.s32.totalorder %s178, %s180
      %p184 = scmp.eq.s32.totalorder %s25, 0
      %p185 = por %p183, %p184
      %p186 = scmp.ne.s32.totalorder %s178, %s180
      %p187 = scmp.eq.s32.totalorder %s30, 7
      %p188 = por %p186, %p187
      %p189 = scmp.ne.s32.totalorder %s180, %s181
      %p190 = scmp.eq.s32.totalorder %s30, 0
      %p191 = por %p189, %p190
      %p192 = scmp.ne.s32.totalorder %s180, %s181
      %p193 = scmp.eq.s32.totalorder %s31, 7
      %p194 = por %p192, %p193
      %p196 = scmp.ne.s32.totalorder %s181, %s195
      %p197 = scmp.eq.s32.totalorder %s31, 0
      %p198 = por %p196, %p197
      %s200 = sadd.s32 %s199, 1
      %p203 = scmp.eq.s32.totalorder %s25, 7
      %p204 = scmp.ne.s32.totalorder %s199, %s201
      %p205 = scmp.eq.s32.totalorder %s25, 0
      %p206 = por %p204, %p205
      %p207 = scmp.ne.s32.totalorder %s199, %s201
      %p208 = scmp.eq.s32.totalorder %s30, 7
      %p209 = por %p207, %p208
      %p210 = scmp.ne.s32.totalorder %s201, %s202
      %p211 = scmp.eq.s32.totalorder %s30, 0
      %p212 = por %p210, %p211
      %p213 = scmp.ne.s32.totalorder %s201, %s202
      %p214 = scmp.eq.s32.totalorder %s31, 7
      %p215 = por %p213, %p214
      %p217 = scmp.ne.s32.totalorder %s202, %s216
      %p218 = scmp.eq.s32.totalorder %s31, 0
      %p219 = por %p217, %p218
      %s221 = sadd.s32 %s220, 1
      %p224 = scmp.eq.s32.totalorder %s25, 7
      %p225 = scmp.ne.s32.totalorder %s220, %s222
      %p226 = scmp.eq.s32.totalorder %s25, 0
      %p227 = por %p225, %p226
      %p228 = scmp.ne.s32.totalorder %s220, %s222
      %p229 = scmp.eq.s32.totalorder %s30, 7
      %p230 = por %p228, %p229
      %p231 = scmp.ne.s32.totalorder %s222, %s223
      %p232 = scmp.eq.s32.totalorder %s30, 0
      %p233 = por %p231, %p232
      %p234 = scmp.ne.s32.totalorder %s222, %s223
      %p235 = scmp.eq.s32.totalorder %s31, 7
      %p236 = por %p234, %p235
      %p238 = scmp.ne.s32.totalorder %s223, %s237
      %p239 = scmp.eq.s32.totalorder %s31, 0
      %p240 = por %p238, %p239
      %s242 = sadd.s32 %s241, 1
      %p245 = scmp.eq.s32.totalorder %s25, 7
      %p246 = scmp.ne.s32.totalorder %s241, %s243
      %p247 = scmp.eq.s32.totalorder %s25, 0
      %p248 = por %p246, %p247
      %p249 = scmp.ne.s32.totalorder %s241, %s243
      %p250 = scmp.eq.s32.totalorder %s30, 7
      %p251 = por %p249, %p250
      %p252 = scmp.ne.s32.totalorder %s243, %s244
      %p253 = scmp.eq.s32.totalorder %s30, 0
      %p254 = por %p252, %p253
      %p255 = scmp.ne.s32.totalorder %s243, %s244
      %p256 = scmp.eq.s32.totalorder %s31, 7
      %p257 = por %p255, %p256
      %p259 = scmp.ne.s32.totalorder %s244, %s258
      %p260 = scmp.eq.s32.totalorder %s31, 0
      %p261 = por %p259, %p260
      %s263 = sadd.s32 %s262, 1
      %p266 = scmp.eq.s32.totalorder %s25, 7
      %p267 = scmp.ne.s32.totalorder %s262, %s264
      %p268 = scmp.eq.s32.totalorder %s25, 0
      %p269 = por %p267, %p268
      %p270 = scmp.ne.s32.totalorder %s262, %s264
      %p271 = scmp.eq.s32.totalorder %s30, 7
      %p272 = por %p270, %p271
      %p273 = scmp.ne.s32.totalorder %s264, %s265
      %p274 = scmp.eq.s32.totalorder %s30, 0
      %p275 = por %p273, %p274
      %p276 = scmp.ne.s32.totalorder %s264, %s265
      %p277 = scmp.eq.s32.totalorder %s31, 7
      %p278 = por %p276, %p277
      %p280 = scmp.ne.s32.totalorder %s265, %s279
      %p281 = scmp.eq.s32.totalorder %s31, 0
      %p282 = por %p280, %p281
      %s283 = ssub.s32 %s32, %s44
      %p284 = scmp.eq.s32.totalorder %s283, 0
      %s286 = sadd.s32 %s285, 1
      %s287 = scalar_select %p284, %s285, %s286
      %p290 = pneg %p284
      %p291 = scmp.eq.s32.totalorder %s25, 7
      %p292 = por %p290, %p291
      %p293 = scmp.ne.s32.totalorder %s285, %s288
      %p294 = scmp.eq.s32.totalorder %s25, 0
      %p295 = por %p293, %p294
      %p296 = scmp.ne.s32.totalorder %s285, %s288
      %p297 = scmp.eq.s32.totalorder %s30, 7
      %p298 = por %p296, %p297
      %p299 = scmp.ne.s32.totalorder %s288, %s289
      %p300 = scmp.eq.s32.totalorder %s30, 0
      %p301 = por %p299, %p300
      %p302 = scmp.ne.s32.totalorder %s288, %s289
      %p303 = scmp.eq.s32.totalorder %s31, 7
      %p304 = por %p302, %p303
      %p306 = scmp.ne.s32.totalorder %s289, %s305
      %p307 = scmp.eq.s32.totalorder %s31, 0
      %p308 = por %p306, %p307
      %s309 = ssub.s32 %s32, %s44
      %p310 = scmp.eq.s32.totalorder %s309, 0
      %s312 = sadd.s32 %s311, 1
      %s313 = scalar_select %p310, %s311, %s312
      %p316 = pneg %p310
      %p317 = scmp.eq.s32.totalorder %s25, 7
      %p318 = por %p316, %p317
      %p319 = scmp.ne.s32.totalorder %s311, %s314
      %p320 = scmp.eq.s32.totalorder %s25, 0
      %p321 = por %p319, %p320
      %p322 = scmp.ne.s32.totalorder %s311, %s314
      %p323 = scmp.eq.s32.totalorder %s30, 7
      %p324 = por %p322, %p323
      %p325 = scmp.ne.s32.totalorder %s314, %s315
      %p326 = scmp.eq.s32.totalorder %s30, 0
      %p327 = por %p325, %p326
      %p328 = scmp.ne.s32.totalorder %s314, %s315
      %p329 = scmp.eq.s32.totalorder %s31, 7
      %p330 = por %p328, %p329
      %p332 = scmp.ne.s32.totalorder %s315, %s331
      %p333 = scmp.eq.s32.totalorder %s31, 0
      %p334 = por %p332, %p333
      %p335 = scmp.le.s32.totalorder 1, %s25
      %p336 = scmp.lt.s32.totalorder %s25, 9
      %p337 = pnand %p335, %p336
      %p338 = pneg %p337
      // Predicated region
      $region9: #{mlp_classifier_forward.1} parent=5 // pred_check
        _
      $region10: #{mlp_classifier_forward.1} parent=5 // pred_check_branch
        %340 = sbr.rel (%p337) target = $region12
      $region11: #{mlp_classifier_forward.1} parent=5 // pred_region
        %s341 = ssub.s32 %s25, 1
        // Predicated region
        $region13: #{mlp_classifier_forward.1} parent=11 // pred_check
          %p342 = pneg %p86
        $region14: #{mlp_classifier_forward.1} parent=11 // pred_check_branch
          %344 = sbr.rel (%p342) target = $region16
        $region15: #{mlp_classifier_forward.1} parent=11 // pred_region
          _
        $region16: #{mlp_classifier_forward.1} parent=11 // pred_fallthru
          _
        // Predicated region
        $region17: #{mlp_classifier_forward.1} parent=11 // pred_check
          %p345 = pneg %p107
        $region18: #{mlp_classifier_forward.1} parent=11 // pred_check_branch
          %347 = sbr.rel (%p345) target = $region20
        $region19: #{mlp_classifier_forward.1} parent=11 // pred_region
          _
        $region20: #{mlp_classifier_forward.1} parent=11 // pred_fallthru
          _
        // Predicated region
        $region21: #{mlp_classifier_forward.1} parent=11 // pred_check
          %p348 = pneg %p128
        $region22: #{mlp_classifier_forward.1} parent=11 // pred_check_branch
          %350 = sbr.rel (%p348) target = $region24
        $region23: #{mlp_classifier_forward.1} parent=11 // pred_region
          _
        $region24: #{mlp_classifier_forward.1} parent=11 // pred_fallthru
          _
        // Predicated region
        $region25: #{mlp_classifier_forward.1} parent=11 // pred_check
          %p351 = pneg %p149
        $region26: #{mlp_classifier_forward.1} parent=11 // pred_check_branch
          %353 = sbr.rel (%p351) target = $region28
        $region27: #{mlp_classifier_forward.1} parent=11 // pred_region
          _
        $region28: #{mlp_classifier_forward.1} parent=11 // pred_fallthru
          _
        // Predicated region
        $region29: #{mlp_classifier_forward.1} parent=11 // pred_check
          %p354 = pneg %p170
        $region30: #{mlp_classifier_forward.1} parent=11 // pred_check_branch
          %356 = sbr.rel (%p354) target = $region32
        $region31: #{mlp_classifier_forward.1} parent=11 // pred_region
          _
        $region32: #{mlp_classifier_forward.1} parent=11 // pred_fallthru
          _
        // Predicated region
        $region33: #{mlp_classifier_forward.1} parent=11 // pred_check
          %p357 = pneg %p191
        $region34: #{mlp_classifier_forward.1} parent=11 // pred_check_branch
          %359 = sbr.rel (%p357) target = $region36
        $region35: #{mlp_classifier_forward.1} parent=11 // pred_region
          _
        $region36: #{mlp_classifier_forward.1} parent=11 // pred_fallthru
          _
        // Predicated region
        $region37: #{mlp_classifier_forward.1} parent=11 // pred_check
          %p360 = pneg %p212
        $region38: #{mlp_classifier_forward.1} parent=11 // pred_check_branch
          %362 = sbr.rel (%p360) target = $region40
        $region39: #{mlp_classifier_forward.1} parent=11 // pred_region
          _
        $region40: #{mlp_classifier_forward.1} parent=11 // pred_fallthru
          _
        // Predicated region
        $region41: #{mlp_classifier_forward.1} parent=11 // pred_check
          %p363 = pneg %p233
        $region42: #{mlp_classifier_forward.1} parent=11 // pred_check_branch
          %365 = sbr.rel (%p363) target = $region44
        $region43: #{mlp_classifier_forward.1} parent=11 // pred_region
          _
        $region44: #{mlp_classifier_forward.1} parent=11 // pred_fallthru
          _
        // Predicated region
        $region45: #{mlp_classifier_forward.1} parent=11 // pred_check
          %p366 = pneg %p254
        $region46: #{mlp_classifier_forward.1} parent=11 // pred_check_branch
          %368 = sbr.rel (%p366) target = $region48
        $region47: #{mlp_classifier_forward.1} parent=11 // pred_region
          _
        $region48: #{mlp_classifier_forward.1} parent=11 // pred_fallthru
          _
        // Predicated region
        $region49: #{mlp_classifier_forward.1} parent=11 // pred_check
          %p369 = pneg %p275
        $region50: #{mlp_classifier_forward.1} parent=11 // pred_check_branch
          %371 = sbr.rel (%p369) target = $region52
        $region51: #{mlp_classifier_forward.1} parent=11 // pred_region
          _
        $region52: #{mlp_classifier_forward.1} parent=11 // pred_fallthru
          _
      $region12: #{mlp_classifier_forward.1} parent=5 // pred_fallthru
        _
      %p372 = scmp.lt.s32.totalorder %s25, 8
      // Predicated region
      $region53: #{mlp_classifier_forward.1} parent=5 // pred_check
        %p373 = pneg %p372
      $region54: #{mlp_classifier_forward.1} parent=5 // pred_check_branch
        %375 = sbr.rel (%p373) target = $region56
      $region55: #{mlp_classifier_forward.1} parent=5 // pred_region
        // Predicated region
        $region57: #{mlp_classifier_forward.1} parent=55 // pred_check
          %p376 = pneg %p59
        $region58: #{mlp_classifier_forward.1} parent=55 // pred_check_branch
          %378 = sbr.rel (%p376) target = $region60
        $region59: #{mlp_classifier_forward.1} parent=55 // pred_region
          %s379 = smul.u32 8, %s33
          %p380 = scmp.lt.s32.totalorder %s32, 1
          %s381 = scalar_select %p380, %s32, 1
          %p382 = scmp.lt.s32.totalorder %s379, 31
          %s383 = scalar_select %p382, %s379, 31
          %s384 = smul.addr %s381, 32
          %s385 = sadd.s32 %s383, %s384
          %s386 = smul.addr %s385, 8
          %s387 = scalar_lea.vmem %s0, %s386
          %s388 = smul.u32 8, %s33
        $region60: #{mlp_classifier_forward.1} parent=55 // pred_fallthru
          _
      $region56: #{mlp_classifier_forward.1} parent=5 // pred_fallthru
        _
      %p389 = scmp.le.s32.totalorder 1, %s25
      %p390 = scmp.lt.s32.totalorder %s25, 9
      %p391 = pnand %p389, %p390
      %p392 = pneg %p391
      // Predicated region
      $region61: #{mlp_classifier_forward.1} parent=5 // pred_check
        _
      $region62: #{mlp_classifier_forward.1} parent=5 // pred_check_branch
        %394 = sbr.rel (%p391) target = $region64
      $region63: #{mlp_classifier_forward.1} parent=5 // pred_region
        %s395 = ssub.s32 %s25, 1
        %s396 = smul.u32 8, %s35
        %p397 = scmp.lt.s32.totalorder %s34, 1
        %s398 = scalar_select %p397, %s34, 1
        %p399 = scmp.lt.s32.totalorder %s396, 31
        %s400 = scalar_select %p399, %s396, 31
        %s401 = smul.addr %s398, 32
        %s402 = sadd.s32 %s400, %s401
        %s403 = smul.addr %s402, 8
        %s404 = scalar_lea.vmem %s0, %s403
        %p405 = pneg %p65
        %p406 = pneg %p62
        %p407 = pneg %p86
        %p408 = pneg %p83
        %p409 = pneg %p107
        %p410 = pneg %p104
        %p411 = pneg %p128
        %p412 = pneg %p125
        %p413 = pneg %p149
        %p414 = pneg %p146
        %p415 = pneg %p170
        %p416 = pneg %p167
        %p417 = pneg %p191
        %p418 = pneg %p188
        %p419 = pneg %p212
        %p420 = pneg %p209
        %p421 = pneg %p233
        %p422 = pneg %p230
        %p423 = pneg %p254
        %p424 = pneg %p251
        %p425 = pneg %p275
        %p426 = pneg %p272
        %p427 = pneg %p301
        %p428 = pneg %p298
        %s429 = sand.u32 %s288, 1
        %s430 = scalar_lea.sflag [#allocation4], %s429
        %s431 = sand.u32 %s288, 1
        %s432 = scalar_lea.vmem [#allocation3], %s431
        %p433 = pneg %p327
        %p434 = pneg %p324
        %s435 = sand.u32 %s314, 1
        %s436 = scalar_lea.sflag [#allocation6], %s435
        %s437 = sand.u32 %s314, 1
        %s438 = scalar_lea.vmem [#allocation5], %s437
        %s439 = smul.u32 8, %s35
        %p440 = scmp.lt.s32.totalorder %s34, 1
        %s441 = scalar_select %p440, %s34, 1
        %p442 = scmp.lt.s32.totalorder %s439, 31
        %s443 = scalar_select %p442, %s439, 31
        %s444 = smul.addr %s441, 32
        %s445 = sadd.s32 %s443, %s444
        %s446 = smul.addr %s445, 8
        %s447 = scalar_lea.vmem %s0, %s446
        %s448 = smul.u32 8, %s35
        %p449 = scmp.eq.s32.totalorder %s35, 0
        // Predicated region
        $region65: #{mlp_classifier_forward.1} parent=63 // pred_check
          %p450 = pneg %p449
        $region66: #{mlp_classifier_forward.1} parent=63 // pred_check_branch
          %452 = sbr.rel (%p450) target = $region68
        $region67: #{mlp_classifier_forward.1} parent=63 // pred_region
          %vm453 = vcmask 516096
          %454 = vst.msk [vmem:[#allocation2] sm:$0x1] %vm453, 0.0
        $region68: #{mlp_classifier_forward.1} parent=63 // pred_fallthru
          _
        %v455 = vld [vmem:[%s447] sm:$0xff]
        %v456 = vld [vmem:[%s447 + $0x8] sm:$0xff]
        %v457 = vld [vmem:[%s447 + $0x10] sm:$0xff]
        %v458 = vld [vmem:[%s447 + $0x18] sm:$0xff]
        %v459 = vld [vmem:[%s447 + $0x20] sm:$0xff]
        %v460 = vld [vmem:[%s447 + $0x28] sm:$0xff]
        %v461 = vld [vmem:[%s447 + $0x30] sm:$0xff]
        %v462 = vld [vmem:[%s447 + $0x38] sm:$0xff]
        %v463 = vld [vmem:[%s1] sm:$0xff]
        %v464 = vld [vmem:[%s1 + $0x8] sm:$0xff]
        %v465 = vld [vmem:[%s1 + $0x10] sm:$0xff]
        %v466 = vld [vmem:[%s1 + $0x18] sm:$0xff]
        %v467 = vld [vmem:[%s2] sm:$0x1]
        %v469 = vperm.slane %v467, 0
        %vm471 = vcmask 261120
        %v473 = vsel %vm471, %v455, 0
        %v476 = vsel %vm471, %v456, 0
        %v479 = vsel %vm471, %v457, 0
        %v482 = vsel %vm471, %v458, 0
        %v485 = vsel %vm471, %v459, 0
        %v488 = vsel %vm471, %v460, 0
        %v491 = vsel %vm471, %v461, 0
        %v494 = vsel %vm471, %v462, 0
        %496 = vmatpush.msra.mxu0 0.0
        %497 = vmatpush.msra.mxu0 0.0
        %498 = vmatpush.msra.mxu0 0.0
        %499 = vmatpush.msra.mxu0 0.0
        %500 = vmatpush.msra.mxu0 0.0
        %501 = vmatpush.msra.mxu0 0.0
        %502 = vmatpush.msra.mxu0 0.0
        %503 = vmatpush.msra.mxu0 0.0
        %504 = vmatpush.msra.mxu0 0.0
        %505 = vmatpush.msra.mxu0 0.0
        %506 = vmatpush.msra.mxu0 0.0
        %507 = vmatpush.msra.mxu0 0.0
        %508 = vmatpush.msra.mxu0 %v466
        %509 = vmatpush.msra.mxu0 %v465
        %510 = vmatpush.msra.mxu0 %v464
        %511 = vmatpush.msra.mxu0 %v463
        %512 = vmatmul.f32.gmra.mxu0 %v473
        %v513 = vpop.f32.mrf.mxu0
        %v514 = vadd.f32 %v469, %v513
        %515 = vmatmul.f32.gmra.mxu0 %v476
        %v516 = vpop.f32.mrf.mxu0
        %v517 = vadd.f32 %v469, %v516
        %518 = vmatmul.f32.gmra.mxu0 %v479
        %v519 = vpop.f32.mrf.mxu0
        %v520 = vadd.f32 %v469, %v519
        %521 = vmatmul.f32.gmra.mxu0 %v482
        %v522 = vpop.f32.mrf.mxu0
        %v523 = vadd.f32 %v469, %v522
        %524 = vmatmul.f32.gmra.mxu0 %v485
        %v525 = vpop.f32.mrf.mxu0
        %v526 = vadd.f32 %v469, %v525
        %527 = vmatmul.f32.gmra.mxu0 %v488
        %v528 = vpop.f32.mrf.mxu0
        %v529 = vadd.f32 %v469, %v528
        %530 = vmatmul.f32.gmra.mxu0 %v491
        %v531 = vpop.f32.mrf.mxu0
        %v532 = vadd.f32 %v469, %v531
        %533 = vmatmul.f32.gmra.mxu0 %v494
        %v534 = vpop.f32.mrf.mxu0
        %v535 = vadd.f32 %v469, %v534
        %536 = vdwg.mxu0
        %v537 = vmax.f32 %v514, 0.0
        %v538 = vmax.f32 %v517, 0.0
        %v539 = vmax.f32 %v520, 0.0
        %v540 = vmax.f32 %v523, 0.0
        %v541 = vmax.f32 %v526, 0.0
        %v542 = vmax.f32 %v529, 0.0
        %v543 = vmax.f32 %v532, 0.0
        %v544 = vmax.f32 %v535, 0.0
        %v545 = vld [vmem:[#allocation2] sm:$0x1]
        %vm546 = vcmask 523264
        %v547 = vsel %vm546, %v537, 0.0
        %v548 = vsel %vm546, %v538, 0.0
        %v549 = vadd.f32 %v547, %v548
        %v550 = vsel %vm546, %v539, 0.0
        %v551 = vadd.f32 %v549, %v550
        %v552 = vsel %vm546, %v540, 0.0
        %v553 = vadd.f32 %v551, %v552
        %v554 = vsel %vm546, %v541, 0.0
        %v555 = vadd.f32 %v553, %v554
        %v556 = vsel %vm546, %v542, 0.0
        %v557 = vadd.f32 %v555, %v556
        %v558 = vsel %vm546, %v543, 0.0
        %v559 = vadd.f32 %v557, %v558
        %v560 = vsel %vm546, %v544, 0.0
        %v561 = vadd.f32 %v559, %v560
        %v562 = vrot.slane %v561, 4
        %v563 = vadd.f32 %v561, %v562
        %v564 = vrot.slane %v563, 2
        %v565 = vadd.f32 %v563, %v564
        %v566 = vrot.slane %v565, 1
        %v567 = vadd.f32 %v565, %v566
        %v568 = vadd.f32 %v545, %v567
        %vm569 = vcmask 516096
        %570 = vst.msk [vmem:[#allocation2] sm:$0x1] %vm569, %v568
        %p571 = scmp.eq.s32.totalorder %s35, 3
        // Predicated region
        $region69: #{mlp_classifier_forward.1} parent=63 // pred_check
          %p572 = pneg %p571
        $region70: #{mlp_classifier_forward.1} parent=63 // pred_check_branch
          %574 = sbr.rel (%p572) target = $region72
        $region71: #{mlp_classifier_forward.1} parent=63 // pred_region
          %v575 = vld [vmem:[#allocation2] sm:$0x1]
          %v576 = vmul.f32 %v575, 0.00390625
          %v577 = vld [vmem:[%s3] sm:$0xff]
          %v578 = vld [vmem:[%s3 + $0x8] sm:$0xff]
          %v579 = vld [vmem:[%s3 + $0x10] sm:$0xff]
          %v580 = vld [vmem:[%s3 + $0x18] sm:$0xff]
          %v581 = vld [vmem:[%s3 + $0x20] sm:$0xff]
          %v582 = vld [vmem:[%s3 + $0x28] sm:$0xff]
          %v583 = vld [vmem:[%s3 + $0x30] sm:$0xff]
          %v584 = vld [vmem:[%s3 + $0x38] sm:$0xff]
          %v585 = vld [vmem:[%s3 + $0x40] sm:$0xff]
          %v586 = vld [vmem:[%s3 + $0x48] sm:$0xff]
          %v587 = vld [vmem:[%s3 + $0x50] sm:$0xff]
          %v588 = vld [vmem:[%s3 + $0x58] sm:$0xff]
          %v589 = vld [vmem:[%s3 + $0x60] sm:$0xff]
          %v590 = vld [vmem:[%s3 + $0x68] sm:$0xff]
          %v591 = vld [vmem:[%s3 + $0x70] sm:$0xff]
          %v592 = vld [vmem:[%s3 + $0x78] sm:$0xff]
          %v593 = vld [vmem:[%s3 + $0x80] sm:$0xff]
          %v594 = vld [vmem:[%s3 + $0x88] sm:$0xff]
          %v595 = vld [vmem:[%s3 + $0x90] sm:$0xff]
          %v596 = vld [vmem:[%s3 + $0x98] sm:$0xff]
          %v597 = vld [vmem:[%s3 + $0xa0] sm:$0xff]
          %v598 = vld [vmem:[%s3 + $0xa8] sm:$0xff]
          %v599 = vld [vmem:[%s3 + $0xb0] sm:$0xff]
          %v600 = vld [vmem:[%s3 + $0xb8] sm:$0xff]
          %v601 = vld [vmem:[%s3 + $0xc0] sm:$0xff]
          %v602 = vld [vmem:[%s3 + $0xc8] sm:$0xff]
          %v603 = vld [vmem:[%s3 + $0xd0] sm:$0xff]
          %v604 = vld [vmem:[%s3 + $0xd8] sm:$0xff]
          %v605 = vld [vmem:[%s3 + $0xe0] sm:$0xff]
          %v606 = vld [vmem:[%s3 + $0xe8] sm:$0xff]
          %v607 = vld [vmem:[%s3 + $0xf0] sm:$0xff]
          %v608 = vld [vmem:[%s3 + $0xf8] sm:$0xff]
          %v609 = vld [vmem:[%s4] sm:$0xf]
          %v611 = vperm.slane %v609, 0
          %v612 = vperm.slane %v609, 1
          %v613 = vperm.slane %v609, 2
          %v614 = vperm.slane %v609, 3
          %v620 = vsel %vm546, %v576, 0
          %622 = vmatpush.msra.mxu0 0.0
          %623 = vmatpush.msra.mxu0 0.0
          %624 = vmatpush.msra.mxu0 0.0
          %625 = vmatpush.msra.mxu0 0.0
          %626 = vmatpush.msra.mxu0 0.0
          %627 = vmatpush.msra.mxu0 0.0
          %628 = vmatpush.msra.mxu0 0.0
          %629 = vmatpush.msra.mxu0 0.0
          %630 = vmatpush.msra.mxu0 %v605
          %631 = vmatpush.msra.mxu0 %v601
          %632 = vmatpush.msra.mxu0 %v597
          %633 = vmatpush.msra.mxu0 %v593
          %634 = vmatpush.msra.mxu0 %v589
          %635 = vmatpush.msra.mxu0 %v585
          %636 = vmatpush.msra.mxu0 %v581
          %637 = vmatpush.msra.mxu0 %v577
          %638 = vmatmul.f32.gmra.mxu0 %v620
          %v639 = vpop.f32.mrf.mxu0
          %v640 = vadd.f32 %v611, %v639
          %641 = vdwg.mxu0
          %642 = vmatpush.msra.mxu0 0.0
          %643 = vmatpush.msra.mxu0 0.0
          %644 = vmatpush.msra.mxu0 0.0
          %645 = vmatpush.msra.mxu0 0.0
          %646 = vmatpush.msra.mxu0 0.0
          %647 = vmatpush.msra.mxu0 0.0
          %648 = vmatpush.msra.mxu0 0.0
          %649 = vmatpush.msra.mxu0 0.0
          %650 = vmatpush.msra.mxu0 %v606
          %651 = vmatpush.msra.mxu0 %v602
          %652 = vmatpush.msra.mxu0 %v598
          %653 = vmatpush.msra.mxu0 %v594
          %654 = vmatpush.msra.mxu0 %v590
          %655 = vmatpush.msra.mxu0 %v586
          %656 = vmatpush.msra.mxu0 %v582
          %657 = vmatpush.msra.mxu0 %v578
          %658 = vmatmul.f32.gmra.mxu0 %v620
          %v659 = vpop.f32.mrf.mxu0
          %v660 = vadd.f32 %v612, %v659
          %661 = vdwg.mxu0
          %662 = vmatpush.msra.mxu0 0.0
          %663 = vmatpush.msra.mxu0 0.0
          %664 = vmatpush.msra.mxu0 0.0
          %665 = vmatpush.msra.mxu0 0.0
          %666 = vmatpush.msra.mxu0 0.0
          %667 = vmatpush.msra.mxu0 0.0
          %668 = vmatpush.msra.mxu0 0.0
          %669 = vmatpush.msra.mxu0 0.0
          %670 = vmatpush.msra.mxu0 %v607
          %671 = vmatpush.msra.mxu0 %v603
          %672 = vmatpush.msra.mxu0 %v599
          %673 = vmatpush.msra.mxu0 %v595
          %674 = vmatpush.msra.mxu0 %v591
          %675 = vmatpush.msra.mxu0 %v587
          %676 = vmatpush.msra.mxu0 %v583
          %677 = vmatpush.msra.mxu0 %v579
          %678 = vmatmul.f32.gmra.mxu0 %v620
          %v679 = vpop.f32.mrf.mxu0
          %v680 = vadd.f32 %v613, %v679
          %681 = vdwg.mxu0
          %682 = vmatpush.msra.mxu0 0.0
          %683 = vmatpush.msra.mxu0 0.0
          %684 = vmatpush.msra.mxu0 0.0
          %685 = vmatpush.msra.mxu0 0.0
          %686 = vmatpush.msra.mxu0 0.0
          %687 = vmatpush.msra.mxu0 0.0
          %688 = vmatpush.msra.mxu0 0.0
          %689 = vmatpush.msra.mxu0 0.0
          %690 = vmatpush.msra.mxu0 %v608
          %691 = vmatpush.msra.mxu0 %v604
          %692 = vmatpush.msra.mxu0 %v600
          %693 = vmatpush.msra.mxu0 %v596
          %694 = vmatpush.msra.mxu0 %v592
          %695 = vmatpush.msra.mxu0 %v588
          %696 = vmatpush.msra.mxu0 %v584
          %697 = vmatpush.msra.mxu0 %v580
          %698 = vmatmul.f32.gmra.mxu0 %v620
          %v699 = vpop.f32.mrf.mxu0
          %v700 = vadd.f32 %v614, %v699
          %701 = vdwg.mxu0
          %v702 = vld [vmem:[%s5] sm:$0xf]
          %v704 = vperm.slane %v702, 0
          %v705 = vperm.slane %v702, 1
          %v706 = vperm.slane %v702, 2
          %v707 = vperm.slane %v702, 3
          %v712 = vmul.f32 %v640, %v704
          %v713 = vmul.f32 %v660, %v705
          %v714 = vmul.f32 %v680, %v706
          %v715 = vmul.f32 %v700, %v707
          %v716 = vld [vmem:[%s6] sm:$0xf]
          %v718 = vperm.slane %v716, 0
          %v719 = vperm.slane %v716, 1
          %v720 = vperm.slane %v716, 2
          %v721 = vperm.slane %v716, 3
          %v726 = vadd.f32 %v712, %v718
          %v727 = vadd.f32 %v713, %v719
          %v728 = vadd.f32 %v714, %v720
          %v729 = vadd.f32 %v715, %v721
          %v730 = vmax.f32 %v726, 0.0
          %v731 = vmax.f32 %v727, 0.0
          %v732 = vmax.f32 %v728, 0.0
          %v733 = vmax.f32 %v729, 0.0
          %v734 = vld [vmem:[%s7] sm:$0xff]
          %v735 = vld [vmem:[%s7 + $0x8] sm:$0xff]
          %v736 = vld [vmem:[%s7 + $0x10] sm:$0xff]
          %v737 = vld [vmem:[%s7 + $0x18] sm:$0xff]
          %v738 = vld [vmem:[%s7 + $0x20] sm:$0xff]
          %v739 = vld [vmem:[%s7 + $0x28] sm:$0xff]
          %v740 = vld [vmem:[%s7 + $0x30] sm:$0xff]
          %v741 = vld [vmem:[%s7 + $0x38] sm:$0xff]
          %v742 = vld [vmem:[%s7 + $0x40] sm:$0xff]
          %v743 = vld [vmem:[%s7 + $0x48] sm:$0xff]
          %v744 = vld [vmem:[%s7 + $0x50] sm:$0xff]
          %v745 = vld [vmem:[%s7 + $0x58] sm:$0xff]
          %v746 = vld [vmem:[%s7 + $0x60] sm:$0xff]
          %v747 = vld [vmem:[%s7 + $0x68] sm:$0xff]
          %v748 = vld [vmem:[%s7 + $0x70] sm:$0xff]
          %v749 = vld [vmem:[%s7 + $0x78] sm:$0xff]
          %v750 = vld [vmem:[%s7 + $0x80] sm:$0xff]
          %v751 = vld [vmem:[%s7 + $0x88] sm:$0xff]
          %v752 = vld [vmem:[%s7 + $0x90] sm:$0xff]
          %v753 = vld [vmem:[%s7 + $0x98] sm:$0xff]
          %v754 = vld [vmem:[%s7 + $0xa0] sm:$0xff]
          %v755 = vld [vmem:[%s7 + $0xa8] sm:$0xff]
          %v756 = vld [vmem:[%s7 + $0xb0] sm:$0xff]
          %v757 = vld [vmem:[%s7 + $0xb8] sm:$0xff]
          %v758 = vld [vmem:[%s7 + $0xc0] sm:$0xff]
          %v759 = vld [vmem:[%s7 + $0xc8] sm:$0xff]
          %v760 = vld [vmem:[%s7 + $0xd0] sm:$0xff]
          %v761 = vld [vmem:[%s7 + $0xd8] sm:$0xff]
          %v762 = vld [vmem:[%s7 + $0xe0] sm:$0xff]
          %v763 = vld [vmem:[%s7 + $0xe8] sm:$0xff]
          %v764 = vld [vmem:[%s7 + $0xf0] sm:$0xff]
          %v765 = vld [vmem:[%s7 + $0xf8] sm:$0xff]
          %v766 = vld [vmem:[%s7 + $0x100] sm:$0xff]
          %v767 = vld [vmem:[%s7 + $0x108] sm:$0xff]
          %v768 = vld [vmem:[%s7 + $0x110] sm:$0xff]
          %v769 = vld [vmem:[%s7 + $0x118] sm:$0xff]
          %v770 = vld [vmem:[%s7 + $0x120] sm:$0xff]
          %v771 = vld [vmem:[%s7 + $0x128] sm:$0xff]
          %v772 = vld [vmem:[%s7 + $0x130] sm:$0xff]
          %v773 = vld [vmem:[%s7 + $0x138] sm:$0xff]
          %v774 = vld [vmem:[%s7 + $0x140] sm:$0xff]
          %v775 = vld [vmem:[%s7 + $0x148] sm:$0xff]
          %v776 = vld [vmem:[%s7 + $0x150] sm:$0xff]
          %v777 = vld [vmem:[%s7 + $0x158] sm:$0xff]
          %v778 = vld [vmem:[%s7 + $0x160] sm:$0xff]
          %v779 = vld [vmem:[%s7 + $0x168] sm:$0xff]
          %v780 = vld [vmem:[%s7 + $0x170] sm:$0xff]
          %v781 = vld [vmem:[%s7 + $0x178] sm:$0xff]
          %v782 = vld [vmem:[%s7 + $0x180] sm:$0xff]
          %v783 = vld [vmem:[%s7 + $0x188] sm:$0xff]
          %v784 = vld [vmem:[%s7 + $0x190] sm:$0xff]
          %v785 = vld [vmem:[%s7 + $0x198] sm:$0xff]
          %v786 = vld [vmem:[%s7 + $0x1a0] sm:$0xff]
          %v787 = vld [vmem:[%s7 + $0x1a8] sm:$0xff]
          %v788 = vld [vmem:[%s7 + $0x1b0] sm:$0xff]
          %v789 = vld [vmem:[%s7 + $0x1b8] sm:$0xff]
          %v790 = vld [vmem:[%s7 + $0x1c0] sm:$0xff]
          %v791 = vld [vmem:[%s7 + $0x1c8] sm:$0xff]
          %v792 = vld [vmem:[%s7 + $0x1d0] sm:$0xff]
          %v793 = vld [vmem:[%s7 + $0x1d8] sm:$0xff]
          %v794 = vld [vmem:[%s7 + $0x1e0] sm:$0xff]
          %v795 = vld [vmem:[%s7 + $0x1e8] sm:$0xff]
          %v796 = vld [vmem:[%s7 + $0x1f0] sm:$0xff]
          %v797 = vld [vmem:[%s7 + $0x1f8] sm:$0xff]
          %v798 = vld [vmem:[%s8] sm:$0x1]
          %799 = vmatpush.msra.mxu0 %v749
          %800 = vmatpush.msra.mxu0 %v748
          %801 = vmatpush.msra.mxu0 %v747
          %802 = vmatpush.msra.mxu0 %v746
          %803 = vmatpush.msra.mxu0 %v745
          %804 = vmatpush.msra.mxu0 %v744
          %805 = vmatpush.msra.mxu0 %v743
          %806 = vmatpush.msra.mxu0 %v742
          %807 = vmatpush.msra.mxu0 %v741
          %808 = vmatpush.msra.mxu0 %v740
          %809 = vmatpush.msra.mxu0 %v739
          %810 = vmatpush.msra.mxu0 %v738
          %811 = vmatpush.msra.mxu0 %v737
          %812 = vmatpush.msra.mxu0 %v736
          %813 = vmatpush.msra.mxu0 %v735
          %814 = vmatpush.msra.mxu0 %v734
          %815 = vmatmul.f32.gmra.mxu0 %v730
          %v816 = vpop.f32.mrf.mxu0
          %v817 = vadd.f32 %v798, %v816
          %818 = vdwg.mxu0
          %819 = vmatpush.msra.mxu0 %v765
          %820 = vmatpush.msra.mxu0 %v764
          %821 = vmatpush.msra.mxu0 %v763
          %822 = vmatpush.msra.mxu0 %v762
          %823 = vmatpush.msra.mxu0 %v761
          %824 = vmatpush.msra.mxu0 %v760
          %825 = vmatpush.msra.mxu0 %v759
          %826 = vmatpush.msra.mxu0 %v758
          %827 = vmatpush.msra.mxu0 %v757
          %828 = vmatpush.msra.mxu0 %v756
          %829 = vmatpush.msra.mxu0 %v755
          %830 = vmatpush.msra.mxu0 %v754
          %831 = vmatpush.msra.mxu0 %v753
          %832 = vmatpush.msra.mxu0 %v752
          %833 = vmatpush.msra.mxu0 %v751
          %834 = vmatpush.msra.mxu0 %v750
          %835 = vmatmul.f32.gmra.mxu0 %v731
          %v836 = vpop.f32.mrf.mxu0
          %v837 = vadd.f32 %v817, %v836
          %838 = vdwg.mxu0
          %839 = vmatpush.msra.mxu0 %v781
          %840 = vmatpush.msra.mxu0 %v780
          %841 = vmatpush.msra.mxu0 %v779
          %842 = vmatpush.msra.mxu0 %v778
          %843 = vmatpush.msra.mxu0 %v777
          %844 = vmatpush.msra.mxu0 %v776
          %845 = vmatpush.msra.mxu0 %v775
          %846 = vmatpush.msra.mxu0 %v774
          %847 = vmatpush.msra.mxu0 %v773
          %848 = vmatpush.msra.mxu0 %v772
          %849 = vmatpush.msra.mxu0 %v771
          %850 = vmatpush.msra.mxu0 %v770
          %851 = vmatpush.msra.mxu0 %v769
          %852 = vmatpush.msra.mxu0 %v768
          %853 = vmatpush.msra.mxu0 %v767
          %854 = vmatpush.msra.mxu0 %v766
          %855 = vmatmul.f32.gmra.mxu0 %v732
          %v856 = vpop.f32.mrf.mxu0
          %v857 = vadd.f32 %v837, %v856
          %858 = vdwg.mxu0
          %859 = vmatpush.msra.mxu0 %v797
          %860 = vmatpush.msra.mxu0 %v796
          %861 = vmatpush.msra.mxu0 %v795
          %862 = vmatpush.msra.mxu0 %v794
          %863 = vmatpush.msra.mxu0 %v793
          %864 = vmatpush.msra.mxu0 %v792
          %865 = vmatpush.msra.mxu0 %v791
          %866 = vmatpush.msra.mxu0 %v790
          %867 = vmatpush.msra.mxu0 %v789
          %868 = vmatpush.msra.mxu0 %v788
          %869 = vmatpush.msra.mxu0 %v787
          %870 = vmatpush.msra.mxu0 %v786
          %871 = vmatpush.msra.mxu0 %v785
          %872 = vmatpush.msra.mxu0 %v784
          %873 = vmatpush.msra.mxu0 %v783
          %874 = vmatpush.msra.mxu0 %v782
          %875 = vmatmul.f32.gmra.mxu0 %v733
          %v876 = vpop.f32.mrf.mxu0
          %v877 = vadd.f32 %v857, %v876
          %878 = vdwg.mxu0
          %879 = vst [vmem:[%s432] sm:$0x1] %v877
          %v880 = vld [vmem:[%s9] sm:$0xff]
          %v881 = vld [vmem:[%s9 + $0x8] sm:$0xff]
          %v882 = vld [vmem:[%s9 + $0x10] sm:$0xff]
          %v883 = vld [vmem:[%s9 + $0x18] sm:$0xff]
          %v884 = vld [vmem:[%s9 + $0x20] sm:$0xff]
          %v885 = vld [vmem:[%s9 + $0x28] sm:$0xff]
          %v886 = vld [vmem:[%s9 + $0x30] sm:$0xff]
          %v887 = vld [vmem:[%s9 + $0x38] sm:$0xff]
          %v888 = vld [vmem:[%s9 + $0x40] sm:$0xff]
          %v889 = vld [vmem:[%s9 + $0x48] sm:$0xff]
          %v890 = vld [vmem:[%s9 + $0x50] sm:$0xff]
          %v891 = vld [vmem:[%s9 + $0x58] sm:$0xff]
          %v892 = vld [vmem:[%s9 + $0x60] sm:$0xff]
          %v893 = vld [vmem:[%s9 + $0x68] sm:$0xff]
          %v894 = vld [vmem:[%s9 + $0x70] sm:$0xff]
          %v895 = vld [vmem:[%s9 + $0x78] sm:$0xff]
          %v896 = vld [vmem:[%s10] sm:$0x1]
          %897 = vmatpush.msra.mxu0 %v895
          %898 = vmatpush.msra.mxu0 %v894
          %899 = vmatpush.msra.mxu0 %v893
          %900 = vmatpush.msra.mxu0 %v892
          %901 = vmatpush.msra.mxu0 %v891
          %902 = vmatpush.msra.mxu0 %v890
          %903 = vmatpush.msra.mxu0 %v889
          %904 = vmatpush.msra.mxu0 %v888
          %905 = vmatpush.msra.mxu0 %v887
          %906 = vmatpush.msra.mxu0 %v886
          %907 = vmatpush.msra.mxu0 %v885
          %908 = vmatpush.msra.mxu0 %v884
          %909 = vmatpush.msra.mxu0 %v883
          %910 = vmatpush.msra.mxu0 %v882
          %911 = vmatpush.msra.mxu0 %v881
          %912 = vmatpush.msra.mxu0 %v880
          %913 = vmatmul.f32.gmra.mxu0 %v877
          %v914 = vpop.f32.mrf.mxu0
          %v915 = vadd.f32 %v896, %v914
          %916 = vdwg.mxu0
          %vm917 = vcmask 73728
          %918 = vst.msk [vmem:[%s438] sm:$0x1] %vm917, %v915
        $region72: #{mlp_classifier_forward.1} parent=63 // pred_fallthru
          _
        %s919 = sand.u32 %s288, 1
        %s920 = scalar_lea.sflag [#allocation4], %s919
        %s921 = sand.u32 %s288, 1
        %s922 = scalar_lea.vmem [#allocation3], %s921
        %s923 = sand.u32 %s314, 1
        %s924 = scalar_lea.sflag [#allocation6], %s923
        %s925 = sand.u32 %s314, 1
        %s926 = scalar_lea.vmem [#allocation5], %s925
        // Predicated region
        $region73: #{mlp_classifier_forward.1} parent=63 // pred_check
          %p927 = pneg %p298
        $region74: #{mlp_classifier_forward.1} parent=63 // pred_check_branch
          %929 = sbr.rel (%p927) target = $region76
        $region75: #{mlp_classifier_forward.1} parent=63 // pred_region
          %931 = vsyncadd %s920, 0
          %s932 = scalar_lea.hbm %s11, %s34
          %s934 = sshll.u32 %s922, 4
          %s935 = int_to_ptr.vmem [resolvable:$true] %s934
          %s936 = sshll.u32 %s932, 4
          %s937 = int_to_ptr.hbm [resolvable:$true] %s936
          %939 = dma.vmem_to_hbm [thread:$0]  %s935, 16, %s937, %s920
        $region76: #{mlp_classifier_forward.1} parent=63 // pred_fallthru
          _
        // Predicated region
        $region77: #{mlp_classifier_forward.1} parent=63 // pred_check
          %p940 = pneg %p324
        $region78: #{mlp_classifier_forward.1} parent=63 // pred_check_branch
          %942 = sbr.rel (%p940) target = $region80
        $region79: #{mlp_classifier_forward.1} parent=63 // pred_region
          %944 = vsyncadd %s924, 0
          %s945 = scalar_lea.hbm %s12, %s34
          %s947 = sshll.u32 %s926, 4
          %s948 = int_to_ptr.vmem [resolvable:$true] %s947
          %s949 = sshll.u32 %s945, 4
          %s950 = int_to_ptr.hbm [resolvable:$true] %s949
          %952 = dma.vmem_to_hbm [thread:$0]  %s948, 16, %s950, %s924
        $region80: #{mlp_classifier_forward.1} parent=63 // pred_fallthru
          _
      $region64: #{mlp_classifier_forward.1} parent=5 // pred_fallthru
        _
      %p953 = scmp.le.s32.totalorder 2, %s25
      // Predicated region
      $region81: #{mlp_classifier_forward.1} parent=5 // pred_check
        %p954 = pneg %p953
      $region82: #{mlp_classifier_forward.1} parent=5 // pred_check_branch
        %956 = sbr.rel (%p954) target = $region84
      $region83: #{mlp_classifier_forward.1} parent=5 // pred_region
        %s957 = ssub.s32 %s25, 2
        // Predicated region
        $region85: #{mlp_classifier_forward.1} parent=83 // pred_check
          %p958 = pneg %p304
        $region86: #{mlp_classifier_forward.1} parent=83 // pred_check_branch
          %960 = sbr.rel (%p958) target = $region88
        $region87: #{mlp_classifier_forward.1} parent=83 // pred_region
          %s961 = sand.u32 %s289, 1
          %s962 = scalar_lea.sflag [#allocation4], %s961
          %s963 = sand.u32 %s289, 1
          %s964 = scalar_lea.vmem [#allocation3], %s963
          %966 = dma.done %s962, 16
        $region88: #{mlp_classifier_forward.1} parent=83 // pred_fallthru
          _
        // Predicated region
        $region89: #{mlp_classifier_forward.1} parent=83 // pred_check
          %p967 = pneg %p330
        $region90: #{mlp_classifier_forward.1} parent=83 // pred_check_branch
          %969 = sbr.rel (%p967) target = $region92
        $region91: #{mlp_classifier_forward.1} parent=83 // pred_region
          %s970 = sand.u32 %s315, 1
          %s971 = scalar_lea.sflag [#allocation6], %s970
          %s972 = sand.u32 %s315, 1
          %s973 = scalar_lea.vmem [#allocation5], %s972
          %975 = dma.done %s971, 16
        $region92: #{mlp_classifier_forward.1} parent=83 // pred_fallthru
          _
      $region84: #{mlp_classifier_forward.1} parent=5 // pred_fallthru
        _
    $region6: #{mlp_classifier_forward.1} parent=1 // loop_footer
      %s29 = sadd.s32 1, %s25
    $region7: #{mlp_classifier_forward.1} parent=1 // loop_footer_branch
      %24 = sbr.rel target = $region3
    $region8: #{mlp_classifier_forward.1} parent=1 // loop_exit
      _
    %976 = vsyncpa [#allocation4], 1
    %s977 = scalar_lea.sflag [#allocation4], 1
    %978 = vsyncpa %s977, 1
    %979 = vsyncpa [#allocation6], 1
    %s980 = scalar_lea.sflag [#allocation6], 1
    %981 = vsyncpa %s980, 1

</llo_original>
